<compile_context>
chip_gen: v7x
topology: tpu7x:2x2x1
jax: 0.10.0
libtpu: 0.0.40
codegen_flags: <defaults>
</compile_context>

<pallas_src>
import jax
import jax.numpy as jnp
from jax.experimental import pallas as pl
from jax.experimental.pallas import tpu as pltpu

_LANE = 128
_VMEM_LIMIT_BYTES = 48 * 1024 * 1024   # explicit scoped-VMEM limit (v5e default is only 16 MiB)
_TILE_BUDGET_BYTES = 16 * 1024 * 1024  # budget for double-buffered (in + out) tiles
_MAX_TILE_D = 2048                     # diminishing returns past ~2K lanes


def _softmax_dim0_kernel(x_ref, o_ref):
    """Stable softmax over axis 0 (sublanes) of an (N, TD) column tile."""
    x = x_ref[...].astype(jnp.float32)                   # upcast for accuracy
    x_max = jnp.max(x, axis=0, keepdims=True)            # (1, TD) sublane reduce (XLU)
    exp_x = jnp.exp(x - x_max)                           # EUP transcendental
    sum_exp = jnp.sum(exp_x, axis=0, keepdims=True)      # (1, TD)
    inv = pl.reciprocal(sum_exp, approx=False)           # 1 recip per column, not N*TD divides
    o_ref[...] = (exp_x * inv).astype(o_ref.dtype)


def _softmax_row_kernel(x_ref, o_ref):
    """Stable softmax over the lane axis of a (1, N) row (1-D input path)."""
    x = x_ref[...].astype(jnp.float32)
    x_max = jnp.max(x, axis=1, keepdims=True)            # lane reduce (XLU)
    exp_x = jnp.exp(x - x_max)
    sum_exp = jnp.sum(exp_x, axis=1, keepdims=True)
    inv = pl.reciprocal(sum_exp, approx=False)
    o_ref[...] = (exp_x * inv).astype(o_ref.dtype)


def _pick_tile_d(n: int, d: int, itemsize: int) -> int:
    """Pick a lane-dense column-tile width that fits the VMEM budget."""
    per_lane = 2 * 2 * n * itemsize          # 2 buffers x (in + out) bytes per lane column
    cap = (_TILE_BUDGET_BYTES // max(per_lane, 1)) // _LANE * _LANE
    cap = max(_LANE, min(cap, _MAX_TILE_D))  # 128 <= TD <= 2048 lanes
    # If D fits in one tile, use the full (possibly non-128-multiple) width;
    # a block equal to the full array dim is always legal.
    return d if d <= cap else cap


def softmax_stable(x: jax.Array) -> jax.Array:
    """Stable softmax over dim 0, matching the PyTorch SoftmaxStable module."""
    orig_shape = x.shape

    if x.ndim == 1:
        # Softmax over the whole vector: use a lane-major (1, N) row so the
        # output is lane-dense instead of an (N, 1) single-lane tile.
        n = x.shape[0]
        itemsize = x.dtype.itemsize
        out = pl.pallas_call(
            _softmax_row_kernel,
            out_shape=jax.ShapeDtypeStruct((1, n), x.dtype),
            grid=(1,),
            in_specs=[pl.BlockSpec((1, n), lambda i: (0, 0))],
            out_specs=pl.BlockSpec((1, n), lambda i: (0, 0)),
            compiler_params=pltpu.CompilerParams(
                vmem_limit_bytes=_VMEM_LIMIT_BYTES),
            cost_estimate=pl.CostEstimate(
                flops=4 * n, transcendentals=n,
                bytes_accessed=2 * n * itemsize),
        )(x.reshape(1, n))
        return out.reshape(orig_shape)

    # N-D (>= 2): flatten trailing dims to the lane axis.
    x2d = x.reshape(x.shape[0], -1)
    n, d = x2d.shape
    itemsize = x2d.dtype.itemsize
    td = _pick_tile_d(n, d, itemsize)
    grid_d = pl.cdiv(d, td)

    out = pl.pallas_call(
        _softmax_dim0_kernel,
        out_shape=jax.ShapeDtypeStruct((n, d), x2d.dtype),
        grid=(grid_d,),
        in_specs=[pl.BlockSpec((n, td), lambda j: (0, j))],
        out_specs=pl.BlockSpec((n, td), lambda j: (0, j)),
        compiler_params=pltpu.CompilerParams(
            dimension_semantics=("parallel",),       # column tiles are independent (v7x 2 TCs)
            vmem_limit_bytes=_VMEM_LIMIT_BYTES),
        cost_estimate=pl.CostEstimate(
            flops=4 * n * d, transcendentals=n * d,
            bytes_accessed=2 * n * d * itemsize),
    )(x2d)
    return out.reshape(orig_shape)


if __name__ == "__main__":
    key = jax.random.PRNGKey(0)
    k1, k2, k3 = jax.random.split(key, 3)

    def ref_softmax(v):
        v_max = jnp.max(v, axis=0, keepdims=True)
        e = jnp.exp(v - v_max)
        return e / jnp.sum(e, axis=0, keepdims=True)

    # 2-D: seq=8, hidden=32 (softmax over the seq axis, i.e. dim 0).
    x = jax.random.normal(k1, (8, 32), dtype=jnp.float32)
    y = jax.block_until_ready(softmax_stable(x))
    assert y.shape == x.shape and y.dtype == x.dtype
    assert jnp.allclose(y, ref_softmax(x), atol=1e-6, rtol=1e-5)
    assert jnp.allclose(jnp.sum(y, axis=0), jnp.ones((32,)), atol=1e-5)

    # 3-D: (8, 4, 16) — trailing dims flattened onto the lane axis.
    x3 = jax.random.normal(k2, (8, 4, 16), dtype=jnp.float32)
    y3 = jax.block_until_ready(softmax_stable(x3))
    assert y3.shape == x3.shape
    assert jnp.allclose(y3, ref_softmax(x3), atol=1e-6, rtol=1e-5)

    # 1-D: N=40 — lane-major row path.
    x1 = jax.random.normal(k3, (40,), dtype=jnp.float32)
    y1 = jax.block_until_ready(softmax_stable(x1))
    assert y1.shape == x1.shape
    assert jnp.allclose(y1, ref_softmax(x1), atol=1e-6, rtol=1e-5)
    assert jnp.allclose(jnp.sum(y1), 1.0, atol=1e-5)

    print("KERNEL_OK")
</pallas_src>

<mosaic_0001>
module attributes {stable_mosaic.version = 11 : i64} {
  func.func @_softmax_dim0_kernel(%arg0: i32, %arg1: memref<8x32xf32, #tpu.memory_space<vmem>>, %arg2: memref<8x32xf32, #tpu.memory_space<vmem>>) attributes {dimension_semantics = [#tpu.dimension_semantics<parallel>], iteration_bounds = array<i64: 1>, scalar_prefetch = 0 : i64, scratch_operands = 0 : i64, tpu.core_type = #tpu.core_type<tc>, window_params = [{transform_indices = @transform_0, window_bounds = array<i64: 8, 32>}, {transform_indices = @transform_1, window_bounds = array<i64: 8, 32>}]} {
    %c0 = arith.constant 0 : index
    %c0_0 = arith.constant 0 : index
    %0 = vector.load %arg1[%c0, %c0_0] : memref<8x32xf32, #tpu.memory_space<vmem>>, vector<8x32xf32>
    %cst = arith.constant dense<0xFF800000> : vector<32xf32>
    %1 = vector.multi_reduction <maximumf>, %0, %cst [0] : vector<8x32xf32> to vector<32xf32>
    %2 = vector.shape_cast %1 : vector<32xf32> to vector<1x32xf32>
    %3 = vector.broadcast %2 : vector<1x32xf32> to vector<8x32xf32>
    %4 = arith.subf %0, %3 : vector<8x32xf32>
    %5 = math.exp %4 : vector<8x32xf32>
    %cst_1 = arith.constant dense<0.000000e+00> : vector<32xf32>
    %6 = vector.multi_reduction <add>, %5, %cst_1 [0] : vector<8x32xf32> to vector<32xf32>
    %7 = vector.shape_cast %6 : vector<32xf32> to vector<1x32xf32>
    %8 = tpu.reciprocal %7 : vector<1x32xf32> -> vector<1x32xf32>
    %9 = vector.broadcast %8 : vector<1x32xf32> to vector<8x32xf32>
    %10 = arith.mulf %5, %9 : vector<8x32xf32>
    %c0_2 = arith.constant 0 : index
    %c0_3 = arith.constant 0 : index
    %11 = vector.load %arg2[%c0_2, %c0_3] : memref<8x32xf32, #tpu.memory_space<vmem>>, vector<8x32xf32>
    tpu.vector_store %arg2[%c0_2, %c0_3], %10 {strides = array<i32>} : memref<8x32xf32, #tpu.memory_space<vmem>>, vector<8x32xf32>,
    return
  }
  func.func @transform_0(%arg0: i32) -> (i32, i32) {
    %c0_i32 = arith.constant 0 : i32
    %c0_i32_0 = arith.constant 0 : i32
    return %c0_i32, %arg0 : i32, i32
  }
  func.func @transform_1(%arg0: i32) -> (i32, i32) {
    %c0_i32 = arith.constant 0 : i32
    %c0_i32_0 = arith.constant 0 : i32
    return %c0_i32, %arg0 : i32, i32
  }
}

</mosaic_0001>

<llo_original>
// kernel: tpu_custom_call.1
$region0: #{tpu_custom_call.1}
  #allocation0 [shape = 'u32[]', space=smem, size = 0x4, offset = 0x4, fixed_abs, tag = 'smem constant byte address 0x4 - core index']
  #allocation1 [shape = 'u32[144,128]{1,0:T(1,128)}', space=vmem, size = 0x12000, scoped, tag = 'internal scratch']
  %s0 = inlined_call_operand.hbm [shape: f32[8,32], index: 0, kind: input, shape index: {}]
  %s1 = inlined_call_operand.hbm [shape: f32[8,32], index: 1, kind: output, shape index: {}]
  %s2 = sld [smem:[#allocation0]]
  $region18: #{tpu_custom_call.1} parent=0
    _
  %s4 = ssub.s32 1, %s2
  %s5 = scalar_select 0, %s4, %s2
  $region1: #{tpu_custom_call.1} parent=0
    #allocation2 [shape = 'u8[4096]{0}', space=vmem, size = 0x1000, scoped, tag = 'input window, operand 0, single buffered']
    #allocation3 [shape = 's32[1]{0}', space=sflag, size = 0x4, scoped, tag = 'scoped memory for tpu_custom_call.1']
    #allocation4 [shape = 's32[1]{0}', space=sflag, size = 0x4, scoped, tag = 'scoped memory for tpu_custom_call.1']
    #allocation5 [shape = 'u8[4096]{0}', space=vmem, size = 0x1000, scoped, tag = 'output window, operand 0, single buffered']
    %6 = vsyncpa [#allocation3], 0
    %7 = vsyncpa [#allocation4], 0
    // Predicated region
    $region2: #{tpu_custom_call.1} parent=1 // pred_check
      _
    $region3: #{tpu_custom_call.1} parent=1 // pred_check_branch
      %9 = sbr.rel (0) target = $region5
    $region4: #{tpu_custom_call.1} parent=1 // pred_region
      %s11 = ssub.s32 128, 128
      %12 = vsyncadd [#allocation3], %s11
      %s14 = sshll.u32 [#allocation2], 4
      %s15 = int_to_ptr.vmem [resolvable:$true] %s14
      %17 = dma.hbm_to_vmem [thread:$0]  %s0, 128, %s15, [#allocation3]
    $region5: #{tpu_custom_call.1} parent=1 // pred_fallthru
      _
    // Predicated region
    $region6: #{tpu_custom_call.1} parent=1 // pred_check
      _
    $region7: #{tpu_custom_call.1} parent=1 // pred_check_branch
      %19 = sbr.rel (0) target = $region9
    $region8: #{tpu_custom_call.1} parent=1 // pred_region
      %20 = dma.done [#allocation3], 128
    $region9: #{tpu_custom_call.1} parent=1 // pred_fallthru
      _
    %v21 = vld [vmem:[#allocation2] sm:$0xff]
    %vm22 = vcmask 261120
    %v23 = vsel %vm22, %v21, -inf
    %v24 = vrot.slane %v23, 4
    %v25 = vmax.f32 %v23, %v24
    %v26 = vrot.slane %v25, 2
    %v27 = vmax.f32 %v25, %v26
    %v28 = vrot.slane %v27, 1
    %v29 = vmax.f32 %v27, %v28
    %v30 = vsub.f32 %v21, %v29
    %v31 = vmul.f32 %v30, 1.442695
    %v32 = vpow.pop %v31
    %v33 = vsel %vm22, %v32, 0.0
    %v34 = vrot.slane %v33, 4
    %v35 = vadd.f32 %v33, %v34
    %v36 = vrot.slane %v35, 2
    %v37 = vadd.f32 %v35, %v36
    %v38 = vrot.slane %v37, 1
    %v39 = vadd.f32 %v37, %v38
    %v40 = vrcp.pop %v39
    %v41 = vmul.f32 %v32, %v40
    %42 = vst.msk [vmem:[#allocation5] sm:$0xff] %vm22, %v41
    // Predicated region
    $region10: #{tpu_custom_call.1} parent=1 // pred_check
      _
    $region11: #{tpu_custom_call.1} parent=1 // pred_check_branch
      %44 = sbr.rel (0) target = $region13
    $region12: #{tpu_custom_call.1} parent=1 // pred_region
      %s46 = ssub.s32 128, 128
      %47 = vsyncadd [#allocation4], %s46
      %s49 = sshll.u32 [#allocation5], 4
      %s50 = int_to_ptr.vmem [resolvable:$true] %s49
      %52 = dma.vmem_to_hbm [thread:$0]  %s50, 128, %s1, [#allocation4]
    $region13: #{tpu_custom_call.1} parent=1 // pred_fallthru
      _
    // Predicated region
    $region14: #{tpu_custom_call.1} parent=1 // pred_check
      _
    $region15: #{tpu_custom_call.1} parent=1 // pred_check_branch
      %54 = sbr.rel (0) target = $region17
    $region16: #{tpu_custom_call.1} parent=1 // pred_region
      %55 = dma.done [#allocation4], 128
    $region17: #{tpu_custom_call.1} parent=1 // pred_fallthru
      _
    %56 = vsyncpa [#allocation3], 1
    %57 = vsyncpa [#allocation4], 1

</llo_original>
